<compile_context>
chip_gen: v7x
topology: tpu7x:2x2x1
jax: 0.10.0
libtpu: 0.0.40
codegen_flags: <defaults>
</compile_context>

<pallas_src>
import numpy as np
import jax
import jax.numpy as jnp
from jax import lax
from jax.experimental import pallas as pl
from jax.experimental.pallas import tpu as pltpu

PATCH = 8            # BM3D block size
STRIDE = 4           # sliding step between reference blocks
THRESH_MULT = 2.7    # BM3D step-1 hard-threshold multiplier (lambda_3d)
GROUP_LANES = 64     # 8 patches per stacked group -> 64x64 kron constants


def _dct_matrix(n):
    """Orthonormal DCT-II matrix (n x n), deterministic, built in-script."""
    k = np.arange(n)[:, None].astype(np.float64)
    m = np.arange(n)[None, :].astype(np.float64)
    d = np.cos(np.pi * (2.0 * m + 1.0) * k / (2.0 * n)) * np.sqrt(2.0 / n)
    d[0, :] *= 1.0 / np.sqrt(2.0)
    return d.astype(np.float32)


def _make_kernel(H, W, nA, nB, nh):
    """Build the per-plane kernel.

    nA: number of lane-aligned (offset % 8 == 0) column windows per band.
    nB: number of +4-offset (offset % 8 == 4) column windows per band.
    nh: number of 8-row bands (vertical stride 4).
    """
    f32 = jnp.float32
    wA_len = nA * PATCH
    wB_len = nB * PATCH
    GA = -(-wA_len // GROUP_LANES)                     # ceil
    GB = (-(-wB_len // GROUP_LANES)) if nB > 0 else 0
    Gp = GA + GB

    def _chunks(band, width):
        """Slice an (8, >=width) band into zero-padded (8, 64) chunks."""
        out = []
        g = -(-width // GROUP_LANES)
        for gi in range(g):
            lo = gi * GROUP_LANES
            hi = min(lo + GROUP_LANES, width)
            c = band[:, lo:hi]
            if hi - lo < GROUP_LANES:
                c = jnp.concatenate(
                    [c, jnp.zeros((PATCH, GROUP_LANES - (hi - lo)), f32)],
                    axis=1)
            out.append(c)
        return out

    def _unstack(stacked, g0, g, width):
        """Inverse of _chunks: groups [g0, g0+g) of `stacked` -> (8, width)."""
        parts = [stacked[PATCH * (g0 + gi):PATCH * (g0 + gi + 1), :]
                 for gi in range(g)]
        full = jnp.concatenate(parts, axis=1) if len(parts) > 1 else parts[0]
        return full[:, :width]

    def kernel(sigma_ref,                               # scalar prefetch (SMEM)
               d_ref, dt_ref, k8t_ref, k8_ref, ks_ref, x_ref,   # inputs
               o_ref,                                   # output
               acc_ref, wgt_ref):                       # VMEM scratch
        Dm = d_ref[...]          # (8, 8)   DCT
        Dt = dt_ref[...]         # (8, 8)   DCT^T
        K8t = k8t_ref[...]       # (64, 64) kron(I_8, D^T)
        K8 = k8_ref[...]         # (64, 64) kron(I_8, D)
        KS = ks_ref[...]         # (64, 64) kron(I_8, ones(8,8))
        thr = THRESH_MULT * sigma_ref[0]

        # DC positions inside the stacked (8*Gp, 64) coefficient matrix:
        # row 0 of every 8-row group, lane 0 of every 8-lane block.
        rows = lax.broadcasted_iota(jnp.int32, (PATCH * Gp, GROUP_LANES), 0)
        cols = lax.broadcasted_iota(jnp.int32, (PATCH * Gp, GROUP_LANES), 1)
        dc_mask = ((rows & (PATCH - 1)) == 0) & ((cols & (PATCH - 1)) == 0)

        acc_ref[...] = jnp.zeros((H, W), f32)
        wgt_ref[...] = jnp.zeros((H, W), f32)

        def band_body(t, carry):
            i = pl.multiple_of(t * STRIDE, STRIDE)
            strip = x_ref[pl.ds(i, PATCH), :].astype(f32)        # (8, W)

            # Vertical DCT, shared by both column-offset families (exact,
            # tiny matmul; no block-diagonal waste).
            v = jnp.dot(Dm, strip, preferred_element_type=f32)   # (8, W)

            # Stack 8-patch groups of both families along sublanes.
            chunks = _chunks(v, wA_len)
            if nB > 0:
                vB = v[:, STRIDE:STRIDE + wB_len]                # +4 offset family
                chunks += _chunks(vB, wB_len)
            stack = jnp.concatenate(chunks, axis=0)              # (8*Gp, 64)

            # Horizontal DCT of every patch in one matmul (M = 8*Gp).
            coef = jnp.dot(stack, K8t, preferred_element_type=f32)
            keep = (jnp.abs(coef) > thr) | dc_mask
            keep_f = keep.astype(f32)
            coef_t = jnp.where(keep, coef, 0.0)

            # Lane-direction per-patch partial counts, broadcast over each
            # patch's 8 lanes (tiny 64x64 constant; replaces SPREAD matmul).
            lane_cnt = jnp.dot(keep_f, KS, preferred_element_type=f32)

            # Horizontal inverse DCT.
            y = jnp.dot(coef_t, K8, preferred_element_type=f32)

            # ---- family A (lane-aligned windows) ----
            yA = _unstack(y, 0, GA, wA_len)                      # (8, nA*8)
            cA = _unstack(lane_cnt, 0, GA, wA_len)
            recA = jnp.dot(Dt, yA, preferred_element_type=f32)   # vertical inverse
            cntA = jnp.sum(cA, axis=0, keepdims=True)            # (1, nA*8)
            wA = pl.reciprocal(jnp.maximum(cntA, 1.0), approx=True)
            accA = recA * wA
            wgtA = jnp.broadcast_to(wA, (PATCH, wA_len))
            if wA_len < W:
                zpadA = jnp.zeros((PATCH, W - wA_len), f32)
                accA = jnp.concatenate([accA, zpadA], axis=1)
                wgtA = jnp.concatenate([wgtA, zpadA], axis=1)
            band_acc = accA
            band_wgt = wgtA

            # ---- family B (+4 lane offset windows), merged in registers ----
            if nB > 0:
                yB = _unstack(y, GA, GB, wB_len)
                cB = _unstack(lane_cnt, GA, GB, wB_len)
                recB = jnp.dot(Dt, yB, preferred_element_type=f32)
                cntB = jnp.sum(cB, axis=0, keepdims=True)
                wB = pl.reciprocal(jnp.maximum(cntB, 1.0), approx=True)
                accB = recB * wB
                wgtB = jnp.broadcast_to(wB, (PATCH, wB_len))
                lead = jnp.zeros((PATCH, STRIDE), f32)
                tail_w = W - STRIDE - wB_len
                if tail_w > 0:
                    tail = jnp.zeros((PATCH, tail_w), f32)
                    accB = jnp.concatenate([lead, accB, tail], axis=1)
                    wgtB = jnp.concatenate([lead, wgtB, tail], axis=1)
                else:
                    accB = jnp.concatenate([lead, accB], axis=1)
                    wgtB = jnp.concatenate([lead, wgtB], axis=1)
                band_acc = band_acc + accB
                band_wgt = band_wgt + wgtB

            # Exactly two lane-dense RMW stores per band (strip aggregation).
            acc_ref[pl.ds(i, PATCH), :] += band_acc
            wgt_ref[pl.ds(i, PATCH), :] += band_wgt
            return carry

        lax.fori_loop(0, nh, band_body, 0)

        # Exact division for the final normalization (per review).
        o_ref[...] = (acc_ref[...] / wgt_ref[...]).astype(o_ref.dtype)

    return kernel


def bm3d_denoise(x, sigma):
    """Pallas equivalent of BM3D.forward(x, sigma): x is NCHW, returns NCHW."""
    B, C, H, W = x.shape
    if H < PATCH or W < PATCH:
        raise ValueError(f"spatial size ({H},{W}) must be >= patch size {PATCH}")
    if H % STRIDE or W % STRIDE:
        # TODO(synk): irregular border-flush blocks (H or W not multiples of 4)
        # are not handled by the two-family band decomposition.
        raise ValueError("H and W must be multiples of 4")

    starts_w = list(range(0, W - PATCH + 1, STRIDE))
    nA = sum(1 for j in starts_w if j % PATCH == 0)
    nB = sum(1 for j in starts_w if j % PATCH == STRIDE)
    nh = (H - PATCH) // STRIDE + 1

    d_np = _dct_matrix(PATCH)
    eye8 = np.eye(PATCH, dtype=np.float32)
    d = jnp.asarray(d_np)
    dt = jnp.asarray(np.ascontiguousarray(d_np.T))
    k8t = jnp.asarray(np.kron(eye8, d_np.T).astype(np.float32))   # (64, 64)
    k8 = jnp.asarray(np.kron(eye8, d_np).astype(np.float32))      # (64, 64)
    ks = jnp.asarray(np.kron(eye8, np.ones((PATCH, PATCH), np.float32)))
    sigma_arr = jnp.asarray([float(sigma)], jnp.float32)

    kernel = _make_kernel(H, W, nA, nB, nh)

    # VMEM budget: whole-plane acc/wgt scratch + double-buffered x/o blocks
    # plus ~100 KiB of constants; clamp to stay under v7x's capacity.
    plane = H * W
    need = 2 * plane * 4 + 4 * plane * x.dtype.itemsize + (1 << 20)
    vmem_limit = int(min(100 * 2**20, max(32 * 2**20, 2 * need)))

    return pl.pallas_call(
        kernel,
        out_shape=jax.ShapeDtypeStruct(x.shape, x.dtype),
        grid_spec=pltpu.PrefetchScalarGridSpec(
            num_scalar_prefetch=1,            # sigma lives in SMEM
            grid=(B, C),
            in_specs=[
                pl.BlockSpec((PATCH, PATCH), lambda b, c, sig: (0, 0)),        # D
                pl.BlockSpec((PATCH, PATCH), lambda b, c, sig: (0, 0)),        # D^T
                pl.BlockSpec((GROUP_LANES, GROUP_LANES),
                             lambda b, c, sig: (0, 0)),                        # kron(I8, D^T)
                pl.BlockSpec((GROUP_LANES, GROUP_LANES),
                             lambda b, c, sig: (0, 0)),                        # kron(I8, D)
                pl.BlockSpec((GROUP_LANES, GROUP_LANES),
                             lambda b, c, sig: (0, 0)),                        # kron(I8, 1)
                pl.BlockSpec((None, None, H, W), lambda b, c, sig: (b, c, 0, 0)),
            ],
            out_specs=pl.BlockSpec((None, None, H, W),
                                   lambda b, c, sig: (b, c, 0, 0)),
            scratch_shapes=[pltpu.VMEM((H, W), jnp.float32),   # acc
                            pltpu.VMEM((H, W), jnp.float32)],  # wgt
        ),
        compiler_params=pltpu.CompilerParams(
            dimension_semantics=("parallel", "parallel"),
            vmem_limit_bytes=vmem_limit),
    )(sigma_arr, d, dt, k8t, k8, ks, x)


if __name__ == "__main__":
    B, C, H, W = 2, 4, 16, 16
    key = jax.random.PRNGKey(0)
    k_img, k_noise = jax.random.split(key)
    clean = jax.random.uniform(k_img, (B, C, H, W), jnp.float32)
    sigma = 0.1
    noisy = clean + sigma * jax.random.normal(k_noise, (B, C, H, W), jnp.float32)

    out = bm3d_denoise(noisy, sigma)
    out = jax.block_until_ready(out)

    assert out.shape == noisy.shape
    assert out.dtype == noisy.dtype
    assert bool(jnp.all(jnp.isfinite(out)))
    print("KERNEL_OK")
</pallas_src>

<mosaic_0001>
module attributes {stable_mosaic.version = 11 : i64} {
  func.func @kernel(%arg0: i32, %arg1: i32, %arg2: memref<1xf32, #tpu.memory_space<smem>>, %arg3: memref<8x8xf32, #tpu.memory_space<vmem>>, %arg4: memref<8x8xf32, #tpu.memory_space<vmem>>, %arg5: memref<64x64xf32, #tpu.memory_space<vmem>>, %arg6: memref<64x64xf32, #tpu.memory_space<vmem>>, %arg7: memref<64x64xf32, #tpu.memory_space<vmem>>, %arg8: memref<1x1x16x16xf32, #tpu.memory_space<vmem>>, %arg9: memref<1x1x16x16xf32, #tpu.memory_space<vmem>>, %arg10: memref<16x16xf32, #tpu.memory_space<vmem>>, %arg11: memref<16x16xf32, #tpu.memory_space<vmem>>) attributes {dimension_semantics = [#tpu.dimension_semantics<parallel>, #tpu.dimension_semantics<parallel>], iteration_bounds = array<i64: 2, 4>, scalar_prefetch = 1 : i64, scratch_operands = 2 : i64, tpu.core_type = #tpu.core_type<tc>, window_params = [{pipeline_mode = #tpu.pipeline_mode<synchronous>, transform_indices = @transform_0, window_bounds = array<i64: 8, 8>}, {pipeline_mode = #tpu.pipeline_mode<synchronous>, transform_indices = @transform_1, window_bounds = array<i64: 8, 8>}, {pipeline_mode = #tpu.pipeline_mode<synchronous>, transform_indices = @transform_2, window_bounds = array<i64: 64, 64>}, {pipeline_mode = #tpu.pipeline_mode<synchronous>, transform_indices = @transform_3, window_bounds = array<i64: 64, 64>}, {pipeline_mode = #tpu.pipeline_mode<synchronous>, transform_indices = @transform_4, window_bounds = array<i64: 64, 64>}, {transform_indices = @transform_5, window_bounds = array<i64: 1, 1, 16, 16>}, {transform_indices = @transform_6, window_bounds = array<i64: 1, 1, 16, 16>}]} {
    %c0 = arith.constant 0 : index
    %c0_0 = arith.constant 0 : index
    %0 = vector.load %arg3[%c0, %c0_0] : memref<8x8xf32, #tpu.memory_space<vmem>>, vector<8x8xf32>
    %c0_1 = arith.constant 0 : index
    %c0_2 = arith.constant 0 : index
    %1 = vector.load %arg4[%c0_1, %c0_2] : memref<8x8xf32, #tpu.memory_space<vmem>>, vector<8x8xf32>
    %c0_3 = arith.constant 0 : index
    %c0_4 = arith.constant 0 : index
    %2 = vector.load %arg5[%c0_3, %c0_4] : memref<64x64xf32, #tpu.memory_space<vmem>>, vector<64x64xf32>
    %c0_5 = arith.constant 0 : index
    %c0_6 = arith.constant 0 : index
    %3 = vector.load %arg6[%c0_5, %c0_6] : memref<64x64xf32, #tpu.memory_space<vmem>>, vector<64x64xf32>
    %c0_7 = arith.constant 0 : index
    %c0_8 = arith.constant 0 : index
    %4 = vector.load %arg7[%c0_7, %c0_8] : memref<64x64xf32, #tpu.memory_space<vmem>>, vector<64x64xf32>
    %c0_9 = arith.constant 0 : index
    %5 = memref.load %arg2[%c0_9] : memref<1xf32, #tpu.memory_space<smem>>
    %cst = arith.constant 2.700000e+00 : f32
    %6 = arith.mulf %cst, %5 : f32
    %7 = tpu.iota {dimensions = array<i32: 0>} : vector<16x64xi32>
    %8 = tpu.iota {dimensions = array<i32: 1>} : vector<16x64xi32>
    %c7_i32 = arith.constant 7 : i32
    %9 = vector.broadcast %c7_i32 : i32 to vector<16x64xi32>
    %10 = arith.andi %7, %9 : vector<16x64xi32>
    %c0_i32 = arith.constant 0 : i32
    %11 = vector.broadcast %c0_i32 : i32 to vector<16x64xi32>
    %12 = arith.cmpi eq, %10, %11 : vector<16x64xi32>
    %c7_i32_10 = arith.constant 7 : i32
    %13 = vector.broadcast %c7_i32_10 : i32 to vector<16x64xi32>
    %14 = arith.andi %8, %13 : vector<16x64xi32>
    %c0_i32_11 = arith.constant 0 : i32
    %15 = vector.broadcast %c0_i32_11 : i32 to vector<16x64xi32>
    %16 = arith.cmpi eq, %14, %15 : vector<16x64xi32>
    %17 = arith.andi %12, %16 : vector<16x64xi1>
    %cst_12 = arith.constant 0.000000e+00 : f32
    %18 = vector.broadcast %cst_12 : f32 to vector<16x16xf32>
    %c0_13 = arith.constant 0 : index
    %c0_14 = arith.constant 0 : index
    %19 = vector.load %arg10[%c0_13, %c0_14] : memref<16x16xf32, #tpu.memory_space<vmem>>, vector<16x16xf32>
    tpu.vector_store %arg10[%c0_13, %c0_14], %18 {strides = array<i32>} : memref<16x16xf32, #tpu.memory_space<vmem>>, vector<16x16xf32>,
    %cst_15 = arith.constant 0.000000e+00 : f32
    %20 = vector.broadcast %cst_15 : f32 to vector<16x16xf32>
    %c0_16 = arith.constant 0 : index
    %c0_17 = arith.constant 0 : index
    %21 = vector.load %arg11[%c0_16, %c0_17] : memref<16x16xf32, #tpu.memory_space<vmem>>, vector<16x16xf32>
    tpu.vector_store %arg11[%c0_16, %c0_17], %20 {strides = array<i32>} : memref<16x16xf32, #tpu.memory_space<vmem>>, vector<16x16xf32>,
    %c0_i32_18 = arith.constant 0 : i32
    %c3_i32 = arith.constant 3 : i32
    %22 = arith.addi %c0_i32_18, %c3_i32 : i32
    %c1_i32 = arith.constant 1 : i32
    scf.for %arg12 = %c0_i32_18 to %22 step %c1_i32  : i32 {
      %c4_i32 = arith.constant 4 : i32
      %29 = arith.muli %arg12, %c4_i32 : i32
      %30 = tpu.assume_multiple %29, 4 : i32
      %c0_28 = arith.constant 0 : index
      %c0_29 = arith.constant 0 : index
      %31 = arith.index_cast %30 : i32 to index
      %c0_30 = arith.constant 0 : index
      %32 = vector.load %arg8[%c0_28, %c0_29, %31, %c0_30] : memref<1x1x16x16xf32, #tpu.memory_space<vmem>>, vector<1x1x8x16xf32>
      %33 = vector.shape_cast %32 : vector<1x1x8x16xf32> to vector<8x16xf32>
      %cst_31 = arith.constant dense<0.000000e+00> : vector<8x16xf32>
      %34 = tpu.matmul %0, %33, %cst_31 {dimension_numbers = #tpu.dot_dimension_numbers<[1], [0], [0], [1], [0, 0, 1, 1], [], []>} : vector<8x8xf32>, vector<8x16xf32>, vector<8x16xf32> -> vector<8x16xf32>
      %cst_32 = arith.constant 0.000000e+00 : f32
      %35 = vector.broadcast %cst_32 : f32 to vector<8x48xf32>
      %36 = tpu.concatenate %34, %35 in 1 : vector<8x16xf32>, vector<8x48xf32> -> vector<8x64xf32>
      %37 = vector.extract_strided_slice %34 {offsets = [0, 4], sizes = [8, 8], strides = [1, 1]} : vector<8x16xf32> to vector<8x8xf32>
      %cst_33 = arith.constant 0.000000e+00 : f32
      %38 = vector.broadcast %cst_33 : f32 to vector<8x56xf32>
      %39 = tpu.concatenate %37, %38 in 1 : vector<8x8xf32>, vector<8x56xf32> -> vector<8x64xf32>
      %40 = tpu.concatenate %36, %39 in 0 : vector<8x64xf32>, vector<8x64xf32> -> vector<16x64xf32>
      %cst_34 = arith.constant dense<0.000000e+00> : vector<16x64xf32>
      %41 = tpu.matmul %40, %2, %cst_34 {dimension_numbers = #tpu.dot_dimension_numbers<[1], [0], [0], [1], [0, 0, 1, 1], [], []>} : vector<16x64xf32>, vector<64x64xf32>, vector<16x64xf32> -> vector<16x64xf32>
      %42 = math.absf %41 : vector<16x64xf32>
      %43 = vector.broadcast %6 : f32 to vector<16x64xf32>
      %44 = arith.cmpf ogt, %42, %43 : vector<16x64xf32>
      %45 = arith.ori %44, %17 : vector<16x64xi1>
      %46 = arith.extui %45 : vector<16x64xi1> to vector<16x64xi32>
      %47 = arith.sitofp %46 : vector<16x64xi32> to vector<16x64xf32>
      %cst_35 = arith.constant 0.000000e+00 : f32
      %48 = vector.broadcast %cst_35 : f32 to vector<16x64xf32>
      %49 = arith.select %45, %41, %48 : vector<16x64xi1>, vector<16x64xf32>
      %cst_36 = arith.constant dense<0.000000e+00> : vector<16x64xf32>
      %50 = tpu.matmul %47, %4, %cst_36 {dimension_numbers = #tpu.dot_dimension_numbers<[1], [0], [0], [1], [0, 0, 1, 1], [], []>} : vector<16x64xf32>, vector<64x64xf32>, vector<16x64xf32> -> vector<16x64xf32>
      %cst_37 = arith.constant dense<0.000000e+00> : vector<16x64xf32>
      %51 = tpu.matmul %49, %3, %cst_37 {dimension_numbers = #tpu.dot_dimension_numbers<[1], [0], [0], [1], [0, 0, 1, 1], [], []>} : vector<16x64xf32>, vector<64x64xf32>, vector<16x64xf32> -> vector<16x64xf32>
      %52 = vector.extract_strided_slice %51 {offsets = [0, 0], sizes = [8, 64], strides = [1, 1]} : vector<16x64xf32> to vector<8x64xf32>
      %53 = vector.extract_strided_slice %52 {offsets = [0, 0], sizes = [8, 16], strides = [1, 1]} : vector<8x64xf32> to vector<8x16xf32>
      %54 = vector.extract_strided_slice %50 {offsets = [0, 0], sizes = [8, 64], strides = [1, 1]} : vector<16x64xf32> to vector<8x64xf32>
      %55 = vector.extract_strided_slice %54 {offsets = [0, 0], sizes = [8, 16], strides = [1, 1]} : vector<8x64xf32> to vector<8x16xf32>
      %cst_38 = arith.constant dense<0.000000e+00> : vector<8x16xf32>
      %56 = tpu.matmul %1, %53, %cst_38 {dimension_numbers = #tpu.dot_dimension_numbers<[1], [0], [0], [1], [0, 0, 1, 1], [], []>} : vector<8x8xf32>, vector<8x16xf32>, vector<8x16xf32> -> vector<8x16xf32>
      %cst_39 = arith.constant dense<0.000000e+00> : vector<16xf32>
      %57 = vector.multi_reduction <add>, %55, %cst_39 [0] : vector<8x16xf32> to vector<16xf32>
      %58 = vector.shape_cast %57 : vector<16xf32> to vector<1x16xf32>
      %cst_40 = arith.constant 1.000000e+00 : f32
      %59 = vector.broadcast %cst_40 : f32 to vector<1x16xf32>
      %60 = arith.maximumf %58, %59 : vector<1x16xf32>
      %61 = tpu.reciprocal %60 {approx = true} : vector<1x16xf32> -> vector<1x16xf32>
      %62 = vector.broadcast %61 : vector<1x16xf32> to vector<8x16xf32>
      %63 = arith.mulf %56, %62 : vector<8x16xf32>
      %64 = vector.shape_cast %61 : vector<1x16xf32> to vector<1x16xf32>
      %65 = vector.broadcast %64 : vector<1x16xf32> to vector<8x16xf32>
      %66 = vector.extract_strided_slice %51 {offsets = [8, 0], sizes = [8, 64], strides = [1, 1]} : vector<16x64xf32> to vector<8x64xf32>
      %67 = vector.extract_strided_slice %66 {offsets = [0, 0], sizes = [8, 8], strides = [1, 1]} : vector<8x64xf32> to vector<8x8xf32>
      %68 = vector.extract_strided_slice %50 {offsets = [8, 0], sizes = [8, 64], strides = [1, 1]} : vector<16x64xf32> to vector<8x64xf32>
      %69 = vector.extract_strided_slice %68 {offsets = [0, 0], sizes = [8, 8], strides = [1, 1]} : vector<8x64xf32> to vector<8x8xf32>
      %cst_41 = arith.constant dense<0.000000e+00> : vector<8x8xf32>
      %70 = tpu.matmul %1, %67, %cst_41 {dimension_numbers = #tpu.dot_dimension_numbers<[1], [0], [0], [1], [0, 0, 1, 1], [], []>} : vector<8x8xf32>, vector<8x8xf32>, vector<8x8xf32> -> vector<8x8xf32>
      %cst_42 = arith.constant dense<0.000000e+00> : vector<8xf32>
      %71 = vector.multi_reduction <add>, %69, %cst_42 [0] : vector<8x8xf32> to vector<8xf32>
      %72 = vector.shape_cast %71 : vector<8xf32> to vector<1x8xf32>
      %cst_43 = arith.constant 1.000000e+00 : f32
      %73 = vector.broadcast %cst_43 : f32 to vector<1x8xf32>
      %74 = arith.maximumf %72, %73 : vector<1x8xf32>
      %75 = tpu.reciprocal %74 {approx = true} : vector<1x8xf32> -> vector<1x8xf32>
      %76 = vector.broadcast %75 : vector<1x8xf32> to vector<8x8xf32>
      %77 = arith.mulf %70, %76 : vector<8x8xf32>
      %78 = vector.shape_cast %75 : vector<1x8xf32> to vector<1x8xf32>
      %79 = vector.broadcast %78 : vector<1x8xf32> to vector<8x8xf32>
      %cst_44 = arith.constant 0.000000e+00 : f32
      %80 = vector.broadcast %cst_44 : f32 to vector<8x4xf32>
      %cst_45 = arith.constant 0.000000e+00 : f32
      %81 = vector.broadcast %cst_45 : f32 to vector<8x4xf32>
      %82 = tpu.concatenate %80, %77, %81 in 1 : vector<8x4xf32>, vector<8x8xf32>, vector<8x4xf32> -> vector<8x16xf32>
      %83 = tpu.concatenate %80, %79, %81 in 1 : vector<8x4xf32>, vector<8x8xf32>, vector<8x4xf32> -> vector<8x16xf32>
      %84 = arith.addf %63, %82 : vector<8x16xf32>
      %85 = arith.addf %65, %83 : vector<8x16xf32>
      %86 = arith.index_cast %30 : i32 to index
      %c0_46 = arith.constant 0 : index
      %87 = vector.load %arg10[%86, %c0_46] : memref<16x16xf32, #tpu.memory_space<vmem>>, vector<8x16xf32>
      %88 = arith.addf %87, %84 : vector<8x16xf32>
      %89 = arith.index_cast %30 : i32 to index
      %c0_47 = arith.constant 0 : index
      %90 = vector.load %arg10[%89, %c0_47] : memref<16x16xf32, #tpu.memory_space<vmem>>, vector<8x16xf32>
      tpu.vector_store %arg10[%89, %c0_47], %88 {strides = array<i32>} : memref<16x16xf32, #tpu.memory_space<vmem>>, vector<8x16xf32>,
      %91 = arith.index_cast %30 : i32 to index
      %c0_48 = arith.constant 0 : index
      %92 = vector.load %arg11[%91, %c0_48] : memref<16x16xf32, #tpu.memory_space<vmem>>, vector<8x16xf32>
      %93 = arith.addf %92, %85 : vector<8x16xf32>
      %94 = arith.index_cast %30 : i32 to index
      %c0_49 = arith.constant 0 : index
      %95 = vector.load %arg11[%94, %c0_49] : memref<16x16xf32, #tpu.memory_space<vmem>>, vector<8x16xf32>
      tpu.vector_store %arg11[%94, %c0_49], %93 {strides = array<i32>} : memref<16x16xf32, #tpu.memory_space<vmem>>, vector<8x16xf32>,
    }
    %c3_i32_19 = arith.constant 3 : i32
    %c0_20 = arith.constant 0 : index
    %c0_21 = arith.constant 0 : index
    %23 = vector.load %arg10[%c0_20, %c0_21] : memref<16x16xf32, #tpu.memory_space<vmem>>, vector<16x16xf32>
    %c0_22 = arith.constant 0 : index
    %c0_23 = arith.constant 0 : index
    %24 = vector.load %arg11[%c0_22, %c0_23] : memref<16x16xf32, #tpu.memory_space<vmem>>, vector<16x16xf32>
    %25 = arith.divf %23, %24 : vector<16x16xf32>
    %c0_24 = arith.constant 0 : index
    %c0_25 = arith.constant 0 : index
    %c0_26 = arith.constant 0 : index
    %c0_27 = arith.constant 0 : index
    %26 = vector.load %arg9[%c0_24, %c0_25, %c0_26, %c0_27] : memref<1x1x16x16xf32, #tpu.memory_space<vmem>>, vector<1x1x16x16xf32>
    %27 = vector.shape_cast %26 : vector<1x1x16x16xf32> to vector<16x16xf32>
    %28 = vector.shape_cast %25 : vector<16x16xf32> to vector<1x1x16x16xf32>
    tpu.vector_store %arg9[%c0_24, %c0_25, %c0_26, %c0_27], %28 {strides = array<i32>} : memref<1x1x16x16xf32, #tpu.memory_space<vmem>>, vector<1x1x16x16xf32>,
    return
  }
  func.func @transform_0(%arg0: i32, %arg1: i32, %arg2: memref<1xf32, #tpu.memory_space<smem>>) -> (i32, i32) {
    %c0_i32 = arith.constant 0 : i32
    %c0_i32_0 = arith.constant 0 : i32
    %c0_i32_1 = arith.constant 0 : i32
    return %c0_i32, %c0_i32_0 : i32, i32
  }
  func.func @transform_1(%arg0: i32, %arg1: i32, %arg2: memref<1xf32, #tpu.memory_space<smem>>) -> (i32, i32) {
    %c0_i32 = arith.constant 0 : i32
    %c0_i32_0 = arith.constant 0 : i32
    %c0_i32_1 = arith.constant 0 : i32
    return %c0_i32, %c0_i32_0 : i32, i32
  }
  func.func @transform_2(%arg0: i32, %arg1: i32, %arg2: memref<1xf32, #tpu.memory_space<smem>>) -> (i32, i32) {
    %c0_i32 = arith.constant 0 : i32
    %c0_i32_0 = arith.constant 0 : i32
    %c0_i32_1 = arith.constant 0 : i32
    return %c0_i32, %c0_i32_0 : i32, i32
  }
  func.func @transform_3(%arg0: i32, %arg1: i32, %arg2: memref<1xf32, #tpu.memory_space<smem>>) -> (i32, i32) {
    %c0_i32 = arith.constant 0 : i32
    %c0_i32_0 = arith.constant 0 : i32
    %c0_i32_1 = arith.constant 0 : i32
    return %c0_i32, %c0_i32_0 : i32, i32
  }
  func.func @transform_4(%arg0: i32, %arg1: i32, %arg2: memref<1xf32, #tpu.memory_space<smem>>) -> (i32, i32) {
    %c0_i32 = arith.constant 0 : i32
    %c0_i32_0 = arith.constant 0 : i32
    %c0_i32_1 = arith.constant 0 : i32
    return %c0_i32, %c0_i32_0 : i32, i32
  }
  func.func @transform_5(%arg0: i32, %arg1: i32, %arg2: memref<1xf32, #tpu.memory_space<smem>>) -> (i32, i32, i32, i32) {
    %c0_i32 = arith.constant 0 : i32
    %c0_i32_0 = arith.constant 0 : i32
    %c0_i32_1 = arith.constant 0 : i32
    return %arg0, %arg1, %c0_i32, %c0_i32_0 : i32, i32, i32, i32
  }
  func.func @transform_6(%arg0: i32, %arg1: i32, %arg2: memref<1xf32, #tpu.memory_space<smem>>) -> (i32, i32, i32, i32) {
    %c0_i32 = arith.constant 0 : i32
    %c0_i32_0 = arith.constant 0 : i32
    %c0_i32_1 = arith.constant 0 : i32
    return %arg0, %arg1, %c0_i32, %c0_i32_0 : i32, i32, i32, i32
  }
}

</mosaic_0001>

<llo_original>
// kernel: tpu_custom_call.1
$region0: #{tpu_custom_call.1}
  #allocation0 [shape = 'u32[]', space=smem, size = 0x4, offset = 0x4, fixed_abs, tag = 'smem constant byte address 0x4 - core index']
  #allocation1 [shape = 'u32[144,128]{1,0:T(1,128)}', space=vmem, size = 0x12000, scoped, tag = 'internal scratch']
  #allocation2 [shape = 'f32[16,16]{1,0:T(8,128)}', space=vmem, size = 0x2000, scoped, tag = 'scratch operand']
  #allocation3 [shape = 'f32[16,16]{1,0:T(8,128)}', space=vmem, size = 0x2000, scoped, tag = 'scratch operand']
  #allocation4 [shape = 's32[1]{0}', space=sflag, size = 0x4, scoped, tag = 'scoped memory for tpu_custom_call.1']
  #allocation5 [shape = 'f32[1]{0:T(128)S(6)}', space=smem, size = 0x200, scoped, tag = 'prefetched SMEM operand 0']
  %s0 = inlined_call_operand.<no memory space> [shape: f32[1], index: 0, kind: input, shape index: {}]
  %s1 = inlined_call_operand.hbm [shape: f32[8,8], index: 1, kind: input, shape index: {}]
  %s2 = inlined_call_operand.hbm [shape: f32[8,8], index: 2, kind: input, shape index: {}]
  %s3 = inlined_call_operand.hbm [shape: f32[64,64], index: 3, kind: input, shape index: {}]
  %s4 = inlined_call_operand.hbm [shape: f32[64,64], index: 4, kind: input, shape index: {}]
  %s5 = inlined_call_operand.hbm [shape: f32[64,64], index: 5, kind: input, shape index: {}]
  %s6 = inlined_call_operand.hbm [shape: f32[2,4,16,16], index: 6, kind: input, shape index: {}]
  %s7 = inlined_call_operand.hbm [shape: f32[2,4,16,16], index: 7, kind: output, shape index: {}]
  %s8 = sld [smem:[#allocation0]]
  $region88: #{tpu_custom_call.1} parent=0
    _
  %s10 = ssub.s32 1, %s8
  %s11 = scalar_select 0, %s10, %s8
  %12 = sst [smem:[#allocation5]] %s0
  $region1: #{tpu_custom_call.1} parent=0
    #allocation6 [shape = 'u8[4096]{0}', space=vmem, size = 0x1000, scoped, tag = 'input window, operand 1, single buffered']
    #allocation7 [shape = 's32[2]{0}', space=sflag, size = 0x8, scoped, tag = 'scoped memory for tpu_custom_call.1']
    #allocation8 [shape = 's32[2]{0}', space=sflag, size = 0x8, scoped, tag = 'scoped memory for tpu_custom_call.1']
    #allocation9 [shape = 'u8[4096]{0}', space=vmem, size = 0x1000, scoped, tag = 'input window, operand 2, single buffered']
    #allocation10 [shape = 's32[1]{0}', space=sflag, size = 0x4, scoped, tag = 'scoped memory for tpu_custom_call.1']
    #allocation11 [shape = 'u8[32768]{0}', space=vmem, size = 0x8000, scoped, tag = 'input window, operand 3, single buffered']
    #allocation12 [shape = 'u8[32768]{0}', space=vmem, size = 0x8000, scoped, tag = 'input window, operand 4, single buffered']
    #allocation13 [shape = 's32[1]{0}', space=sflag, size = 0x4, scoped, tag = 'scoped memory for tpu_custom_call.1']
    #allocation14 [shape = 'u8[32768]{0}', space=vmem, size = 0x8000, scoped, tag = 'input window, operand 5, single buffered']
    #allocation15 [shape = 'u8[16384]{0}', space=vmem, size = 0x4000, scoped, tag = 'input window, operand 6']
    #allocation16 [shape = 's32[2]{0}', space=sflag, size = 0x8, scoped, tag = 'scoped memory for tpu_custom_call.1']
    #allocation17 [shape = 'u8[16384]{0}', space=vmem, size = 0x4000, scoped, tag = 'output window, operand 0']
    %13 = vsyncpa [#allocation7], 0
    %14 = vsyncpa [#allocation10], 0
    %15 = vsyncpa [#allocation13], 0
    %16 = vsyncpa [#allocation16], 0
    %s17 = scalar_lea.sflag [#allocation16], 1
    %18 = vsyncpa %s17, 0
    %19 = vsyncpa [#allocation8], 0
    %s20 = scalar_lea.sflag [#allocation8], 1
    %21 = vsyncpa %s20, 0
    loop: start=0, step=1, limit=10
    $region2: #{tpu_custom_call.1} parent=1 // loop_pre_header
      _
    $region3: #{tpu_custom_call.1} parent=1 // loop_header
      %s23 = sphi 0, %s27
      %p24 = scmp.ge.s32.totalorder %s23, 10
      %s30 = sphi 0, %s42
      %s31 = sphi 0, %s38
      %s32 = sphi 0, %s30
      %s33 = sphi 0, %s31
      %s34 = sphi 0, %s32
      %s35 = sphi 0, %s33
      %s43 = sphi 0, %s43
      %s45 = sphi 0, %s43
      %s46 = sphi 0, %s45
      %s60 = sphi 0, %s46
      %s64 = sphi 0, %s64
      %s66 = sphi 0, %s64
      %s67 = sphi 0, %s66
      %s81 = sphi 0, %s67
      %s85 = sphi 0, %s85
      %s87 = sphi 0, %s85
      %s88 = sphi 0, %s87
      %s102 = sphi 0, %s88
      %s106 = sphi 0, %s106
      %s108 = sphi 0, %s106
      %s109 = sphi 0, %s108
      %s123 = sphi 0, %s109
      %s127 = sphi 0, %s127
      %s129 = sphi 0, %s127
      %s130 = sphi 0, %s129
      %s144 = sphi 0, %s130
      %s152 = sphi 0, %s154
      %s155 = sphi 0, %s152
      %s156 = sphi 0, %s155
      %s172 = sphi 0, %s156
      %s180 = sphi 0, %s182
      %s183 = sphi 0, %s180
      %s184 = sphi 0, %s183
      %s200 = sphi 0, %s184
    $region4: #{tpu_custom_call.1} parent=1 // loop_header_branch
      %26 = sbr.rel (%p24) target = $region8
    $region5: #{tpu_custom_call.1} parent=1 // loop_body
      %s28 = ssub.s32 %s23, 1
      %s29 = ssub.s32 %s23, 2
      %s36 = sadd.s32 1, %s31
      %p37 = scmp.ge.s32.totalorder %s36, 4
      %s38 = scalar_select %p37, 0, %s36
      %s39 = sadd.s32 1, %s30
      %s40 = scalar_select %p37, %s39, %s30
      %p41 = scmp.ge.s32.totalorder %s40, 2
      %s42 = scalar_select %p41, 0, %s40
      %s44 = sadd.s32 %s43, 1
      %p47 = scmp.eq.s32.totalorder %s23, 7
      %p48 = scmp.ne.s32.totalorder %s43, %s45
      %p49 = scmp.eq.s32.totalorder %s23, 0
      %p50 = por %p48, %p49
      %p51 = scmp.ne.s32.totalorder %s43, %s45
      %p52 = scmp.eq.s32.totalorder %s28, 7
      %p53 = por %p51, %p52
      %p54 = scmp.ne.s32.totalorder %s45, %s46
      %p55 = scmp.eq.s32.totalorder %s28, 0
      %p56 = por %p54, %p55
      %p57 = scmp.ne.s32.totalorder %s45, %s46
      %p58 = scmp.eq.s32.totalorder %s29, 7
      %p59 = por %p57, %p58
      %p61 = scmp.ne.s32.totalorder %s46, %s60
      %p62 = scmp.eq.s32.totalorder %s29, 0
      %p63 = por %p61, %p62
      %s65 = sadd.s32 %s64, 1
      %p68 = scmp.eq.s32.totalorder %s23, 7
      %p69 = scmp.ne.s32.totalorder %s64, %s66
      %p70 = scmp.eq.s32.totalorder %s23, 0
      %p71 = por %p69, %p70
      %p72 = scmp.ne.s32.totalorder %s64, %s66
      %p73 = scmp.eq.s32.totalorder %s28, 7
      %p74 = por %p72, %p73
      %p75 = scmp.ne.s32.totalorder %s66, %s67
      %p76 = scmp.eq.s32.totalorder %s28, 0
      %p77 = por %p75, %p76
      %p78 = scmp.ne.s32.totalorder %s66, %s67
      %p79 = scmp.eq.s32.totalorder %s29, 7
      %p80 = por %p78, %p79
      %p82 = scmp.ne.s32.totalorder %s67, %s81
      %p83 = scmp.eq.s32.totalorder %s29, 0
      %p84 = por %p82, %p83
      %s86 = sadd.s32 %s85, 1
      %p89 = scmp.eq.s32.totalorder %s23, 7
      %p90 = scmp.ne.s32.totalorder %s85, %s87
      %p91 = scmp.eq.s32.totalorder %s23, 0
      %p92 = por %p90, %p91
      %p93 = scmp.ne.s32.totalorder %s85, %s87
      %p94 = scmp.eq.s32.totalorder %s28, 7
      %p95 = por %p93, %p94
      %p96 = scmp.ne.s32.totalorder %s87, %s88
      %p97 = scmp.eq.s32.totalorder %s28, 0
      %p98 = por %p96, %p97
      %p99 = scmp.ne.s32.totalorder %s87, %s88
      %p100 = scmp.eq.s32.totalorder %s29, 7
      %p101 = por %p99, %p100
      %p103 = scmp.ne.s32.totalorder %s88, %s102
      %p104 = scmp.eq.s32.totalorder %s29, 0
      %p105 = por %p103, %p104
      %s107 = sadd.s32 %s106, 1
      %p110 = scmp.eq.s32.totalorder %s23, 7
      %p111 = scmp.ne.s32.totalorder %s106, %s108
      %p112 = scmp.eq.s32.totalorder %s23, 0
      %p113 = por %p111, %p112
      %p114 = scmp.ne.s32.totalorder %s106, %s108
      %p115 = scmp.eq.s32.totalorder %s28, 7
      %p116 = por %p114, %p115
      %p117 = scmp.ne.s32.totalorder %s108, %s109
      %p118 = scmp.eq.s32.totalorder %s28, 0
      %p119 = por %p117, %p118
      %p120 = scmp.ne.s32.totalorder %s108, %s109
      %p121 = scmp.eq.s32.totalorder %s29, 7
      %p122 = por %p120, %p121
      %p124 = scmp.ne.s32.totalorder %s109, %s123
      %p125 = scmp.eq.s32.totalorder %s29, 0
      %p126 = por %p124, %p125
      %s128 = sadd.s32 %s127, 1
      %p131 = scmp.eq.s32.totalorder %s23, 7
      %p132 = scmp.ne.s32.totalorder %s127, %s129
      %p133 = scmp.eq.s32.totalorder %s23, 0
      %p134 = por %p132, %p133
      %p135 = scmp.ne.s32.totalorder %s127, %s129
      %p136 = scmp.eq.s32.totalorder %s28, 7
      %p137 = por %p135, %p136
      %p138 = scmp.ne.s32.totalorder %s129, %s130
      %p139 = scmp.eq.s32.totalorder %s28, 0
      %p140 = por %p138, %p139
      %p141 = scmp.ne.s32.totalorder %s129, %s130
      %p142 = scmp.eq.s32.totalorder %s29, 7
      %p143 = por %p141, %p142
      %p145 = scmp.ne.s32.totalorder %s130, %s144
      %p146 = scmp.eq.s32.totalorder %s29, 0
      %p147 = por %p145, %p146
      %s148 = ssub.s32 %s30, %s42
      %s149 = ssub.s32 %s31, %s38
      %s150 = sor.u32 %s148, %s149
      %p151 = scmp.eq.s32.totalorder %s150, 0
      %s153 = sadd.s32 %s152, 1
      %s154 = scalar_select %p151, %s152, %s153
      %p157 = pneg %p151
      %p158 = scmp.eq.s32.totalorder %s23, 7
      %p159 = por %p157, %p158
      %p160 = scmp.ne.s32.totalorder %s152, %s155
      %p161 = scmp.eq.s32.totalorder %s23, 0
      %p162 = por %p160, %p161
      %p163 = scmp.ne.s32.totalorder %s152, %s155
      %p164 = scmp.eq.s32.totalorder %s28, 7
      %p165 = por %p163, %p164
      %p166 = scmp.ne.s32.totalorder %s155, %s156
      %p167 = scmp.eq.s32.totalorder %s28, 0
      %p168 = por %p166, %p167
      %p169 = scmp.ne.s32.totalorder %s155, %s156
      %p170 = scmp.eq.s32.totalorder %s29, 7
      %p171 = por %p169, %p170
      %p173 = scmp.ne.s32.totalorder %s156, %s172
      %p174 = scmp.eq.s32.totalorder %s29, 0
      %p175 = por %p173, %p174
      %s176 = ssub.s32 %s30, %s42
      %s177 = ssub.s32 %s31, %s38
      %s178 = sor.u32 %s176, %s177
      %p179 = scmp.eq.s32.totalorder %s178, 0
      %s181 = sadd.s32 %s180, 1
      %s182 = scalar_select %p179, %s180, %s181
      %p185 = pneg %p179
      %p186 = scmp.eq.s32.totalorder %s23, 7
      %p187 = por %p185, %p186
      %p188 = scmp.ne.s32.totalorder %s180, %s183
      %p189 = scmp.eq.s32.totalorder %s23, 0
      %p190 = por %p188, %p189
      %p191 = scmp.ne.s32.totalorder %s180, %s183
      %p192 = scmp.eq.s32.totalorder %s28, 7
      %p193 = por %p191, %p192
      %p194 = scmp.ne.s32.totalorder %s183, %s184
      %p195 = scmp.eq.s32.totalorder %s28, 0
      %p196 = por %p194, %p195
      %p197 = scmp.ne.s32.totalorder %s183, %s184
      %p198 = scmp.eq.s32.totalorder %s29, 7
      %p199 = por %p197, %p198
      %p201 = scmp.ne.s32.totalorder %s184, %s200
      %p202 = scmp.eq.s32.totalorder %s29, 0
      %p203 = por %p201, %p202
      %p204 = scmp.le.s32.totalorder 1, %s23
      %p205 = scmp.lt.s32.totalorder %s23, 9
      %p206 = pnand %p204, %p205
      %p207 = pneg %p206
      // Predicated region
      $region9: #{tpu_custom_call.1} parent=5 // pred_check
        _
      $region10: #{tpu_custom_call.1} parent=5 // pred_check_branch
        %209 = sbr.rel (%p206) target = $region12
      $region11: #{tpu_custom_call.1} parent=5 // pred_region
        %s210 = ssub.s32 %s23, 1
        // Predicated region
        $region13: #{tpu_custom_call.1} parent=11 // pred_check
          %p211 = pneg %p56
        $region14: #{tpu_custom_call.1} parent=11 // pred_check_branch
          %213 = sbr.rel (%p211) target = $region16
        $region15: #{tpu_custom_call.1} parent=11 // pred_region
          %s215 = ssub.s32 128, 128
          %216 = vsyncadd [#allocation7], %s215
          %s218 = sshll.u32 [#allocation6], 4
          %s219 = int_to_ptr.vmem [resolvable:$true] %s218
          %221 = dma.hbm_to_vmem [thread:$0]  %s1, 128, %s219, [#allocation7]
        $region16: #{tpu_custom_call.1} parent=11 // pred_fallthru
          _
        // Predicated region
        $region17: #{tpu_custom_call.1} parent=11 // pred_check
          %p222 = pneg %p77
        $region18: #{tpu_custom_call.1} parent=11 // pred_check_branch
          %224 = sbr.rel (%p222) target = $region20
        $region19: #{tpu_custom_call.1} parent=11 // pred_region
          %s226 = ssub.s32 128, 128
          %227 = vsyncadd [#allocation10], %s226
          %s229 = sshll.u32 [#allocation9], 4
          %s230 = int_to_ptr.vmem [resolvable:$true] %s229
          %232 = dma.hbm_to_vmem [thread:$0]  %s2, 128, %s230, [#allocation10]
        $region20: #{tpu_custom_call.1} parent=11 // pred_fallthru
          _
        // Predicated region
        $region21: #{tpu_custom_call.1} parent=11 // pred_check
          %p233 = pneg %p98
        $region22: #{tpu_custom_call.1} parent=11 // pred_check_branch
          %235 = sbr.rel (%p233) target = $region24
        $region23: #{tpu_custom_call.1} parent=11 // pred_region
          %s237 = ssub.s32 1024, 1024
          %238 = vsyncadd [#allocation10], %s237
          %s239 = sshll.u32 [#allocation11], 4
          %s240 = int_to_ptr.vmem [resolvable:$true] %s239
          %245 = dma.hbm_to_vmem [thread:$0]  %s3, 1024, %s240, [#allocation10], 128, 128, 8
        $region24: #{tpu_custom_call.1} parent=11 // pred_fallthru
          _
        // Predicated region
        $region25: #{tpu_custom_call.1} parent=11 // pred_check
          %p246 = pneg %p119
        $region26: #{tpu_custom_call.1} parent=11 // pred_check_branch
          %248 = sbr.rel (%p246) target = $region28
        $region27: #{tpu_custom_call.1} parent=11 // pred_region
          %s250 = ssub.s32 1024, 1024
          %251 = vsyncadd [#allocation13], %s250
          %s252 = sshll.u32 [#allocation12], 4
          %s253 = int_to_ptr.vmem [resolvable:$true] %s252
          %258 = dma.hbm_to_vmem [thread:$0]  %s4, 1024, %s253, [#allocation13], 128, 128, 8
        $region28: #{tpu_custom_call.1} parent=11 // pred_fallthru
          _
        // Predicated region
        $region29: #{tpu_custom_call.1} parent=11 // pred_check
          %p259 = pneg %p140
        $region30: #{tpu_custom_call.1} parent=11 // pred_check_branch
          %261 = sbr.rel (%p259) target = $region32
        $region31: #{tpu_custom_call.1} parent=11 // pred_region
          %s263 = ssub.s32 1024, 1024
          %264 = vsyncadd [#allocation13], %s263
          %s265 = sshll.u32 [#allocation14], 4
          %s266 = int_to_ptr.vmem [resolvable:$true] %s265
          %271 = dma.hbm_to_vmem [thread:$0]  %s5, 1024, %s266, [#allocation13], 128, 128, 8
        $region32: #{tpu_custom_call.1} parent=11 // pred_fallthru
          _
      $region12: #{tpu_custom_call.1} parent=5 // pred_fallthru
        _
      %p272 = scmp.lt.s32.totalorder %s23, 8
      // Predicated region
      $region33: #{tpu_custom_call.1} parent=5 // pred_check
        %p273 = pneg %p272
      $region34: #{tpu_custom_call.1} parent=5 // pred_check_branch
        %275 = sbr.rel (%p273) target = $region36
      $region35: #{tpu_custom_call.1} parent=5 // pred_region
        // Predicated region
        $region37: #{tpu_custom_call.1} parent=35 // pred_check
          %p276 = pneg %p162
        $region38: #{tpu_custom_call.1} parent=35 // pred_check_branch
          %278 = sbr.rel (%p276) target = $region40
        $region39: #{tpu_custom_call.1} parent=35 // pred_region
          %s279 = sand.u32 %s152, 1
          %s280 = scalar_lea.sflag [#allocation16], %s279
          %s281 = sand.u32 %s152, 1
          %s282 = smul.addr %s281, 16
          %s283 = scalar_lea.vmem [#allocation15], %s282
          %s285 = ssub.s32 256, 256
          %286 = vsyncadd %s280, %s285
          %s287 = smul.addr %s31, 2
          %s288 = smul.addr %s30, 8
          %s289 = sadd.s32 %s287, %s288
          %s290 = smul.addr %s289, 128
          %s291 = scalar_lea.hbm %s6, %s290
          %s292 = sshll.u32 %s283, 4
          %s293 = int_to_ptr.vmem [resolvable:$true] %s292
          %298 = dma.hbm_to_vmem [thread:$0]  %s291, 256, %s293, %s280, 128, 128, 8
        $region40: #{tpu_custom_call.1} parent=35 // pred_fallthru
          _
      $region36: #{tpu_custom_call.1} parent=5 // pred_fallthru
        _
      %p299 = scmp.le.s32.totalorder 1, %s23
      %p300 = scmp.lt.s32.totalorder %s23, 9
      %p301 = pnand %p299, %p300
      %p302 = pneg %p301
      // Predicated region
      $region41: #{tpu_custom_call.1} parent=5 // pred_check
        _
      $region42: #{tpu_custom_call.1} parent=5 // pred_check_branch
        %304 = sbr.rel (%p301) target = $region44
      $region43: #{tpu_custom_call.1} parent=5 // pred_region
        %s305 = ssub.s32 %s23, 1
        // Predicated region
        $region45: #{tpu_custom_call.1} parent=43 // pred_check
          %p306 = pneg %p56
        $region46: #{tpu_custom_call.1} parent=43 // pred_check_branch
          %308 = sbr.rel (%p306) target = $region48
        $region47: #{tpu_custom_call.1} parent=43 // pred_region
          %309 = dma.done [#allocation7], 128
        $region48: #{tpu_custom_call.1} parent=43 // pred_fallthru
          _
        // Predicated region
        $region49: #{tpu_custom_call.1} parent=43 // pred_check
          %p310 = pneg %p77
        $region50: #{tpu_custom_call.1} parent=43 // pred_check_branch
          %312 = sbr.rel (%p310) target = $region52
        $region51: #{tpu_custom_call.1} parent=43 // pred_region
          %313 = dma.done [#allocation10], 128
        $region52: #{tpu_custom_call.1} parent=43 // pred_fallthru
          _
        // Predicated region
        $region53: #{tpu_custom_call.1} parent=43 // pred_check
          %p314 = pneg %p98
        $region54: #{tpu_custom_call.1} parent=43 // pred_check_branch
          %316 = sbr.rel (%p314) target = $region56
        $region55: #{tpu_custom_call.1} parent=43 // pred_region
          %317 = dma.done [#allocation10], 1024
        $region56: #{tpu_custom_call.1} parent=43 // pred_fallthru
          _
        // Predicated region
        $region57: #{tpu_custom_call.1} parent=43 // pred_check
          %p318 = pneg %p119
        $region58: #{tpu_custom_call.1} parent=43 // pred_check_branch
          %320 = sbr.rel (%p318) target = $region60
        $region59: #{tpu_custom_call.1} parent=43 // pred_region
          %321 = dma.done [#allocation13], 1024
        $region60: #{tpu_custom_call.1} parent=43 // pred_fallthru
          _
        // Predicated region
        $region61: #{tpu_custom_call.1} parent=43 // pred_check
          %p322 = pneg %p140
        $region62: #{tpu_custom_call.1} parent=43 // pred_check_branch
          %324 = sbr.rel (%p322) target = $region64
        $region63: #{tpu_custom_call.1} parent=43 // pred_region
          %325 = dma.done [#allocation13], 1024
        $region64: #{tpu_custom_call.1} parent=43 // pred_fallthru
          _
        %s326 = sand.u32 %s155, 1
        %s327 = scalar_lea.sflag [#allocation16], %s326
        %s328 = sand.u32 %s155, 1
        %s329 = smul.addr %s328, 16
        %s330 = scalar_lea.vmem [#allocation15], %s329
        // Predicated region
        $region65: #{tpu_custom_call.1} parent=43 // pred_check
          %p331 = pneg %p168
        $region66: #{tpu_custom_call.1} parent=43 // pred_check_branch
          %333 = sbr.rel (%p331) target = $region68
        $region67: #{tpu_custom_call.1} parent=43 // pred_region
          %334 = dma.done %s327, 256
        $region68: #{tpu_custom_call.1} parent=43 // pred_fallthru
          _
        %p335 = pneg %p56
        %p336 = pneg %p53
        %p337 = pneg %p77
        %p338 = pneg %p74
        %p339 = pneg %p98
        %p340 = pneg %p95
        %p341 = pneg %p119
        %p342 = pneg %p116
        %p343 = pneg %p140
        %p344 = pneg %p137
        %s345 = sand.u32 %s155, 1
        %s346 = scalar_lea.sflag [#allocation16], %s345
        %s347 = sand.u32 %s155, 1
        %s348 = smul.addr %s347, 16
        %s349 = scalar_lea.vmem [#allocation15], %s348
        %p350 = pneg %p168
        %p351 = pneg %p165
        %p352 = pneg %p196
        %p353 = pneg %p193
        %s354 = sand.u32 %s183, 1
        %s355 = scalar_lea.sflag [#allocation8], %s354
        %s356 = sand.u32 %s183, 1
        %s357 = smul.addr %s356, 16
        %s358 = scalar_lea.vmem [#allocation17], %s357
        %v359 = vld [vmem:[#allocation6] sm:$0xff]
        %v360 = vld [vmem:[#allocation9] sm:$0xff]
        %v361 = vld [vmem:[#allocation11] sm:$0xff]
        %v362 = vld [vmem:[#allocation11 + $0x8] sm:$0xff]
        %v363 = vld [vmem:[#allocation11 + $0x10] sm:$0xff]
        %v364 = vld [vmem:[#allocation11 + $0x18] sm:$0xff]
        %v365 = vld [vmem:[#allocation11 + $0x20] sm:$0xff]
        %v366 = vld [vmem:[#allocation11 + $0x28] sm:$0xff]
        %v367 = vld [vmem:[#allocation11 + $0x30] sm:$0xff]
        %v368 = vld [vmem:[#allocation11 + $0x38] sm:$0xff]
        %v369 = vld [vmem:[#allocation12] sm:$0xff]
        %v370 = vld [vmem:[#allocation12 + $0x8] sm:$0xff]
        %v371 = vld [vmem:[#allocation12 + $0x10] sm:$0xff]
        %v372 = vld [vmem:[#allocation12 + $0x18] sm:$0xff]
        %v373 = vld [vmem:[#allocation12 + $0x20] sm:$0xff]
        %v374 = vld [vmem:[#allocation12 + $0x28] sm:$0xff]
        %v375 = vld [vmem:[#allocation12 + $0x30] sm:$0xff]
        %v376 = vld [vmem:[#allocation12 + $0x38] sm:$0xff]
        %v377 = vld [vmem:[#allocation14] sm:$0xff]
        %v378 = vld [vmem:[#allocation14 + $0x8] sm:$0xff]
        %v379 = vld [vmem:[#allocation14 + $0x10] sm:$0xff]
        %v380 = vld [vmem:[#allocation14 + $0x18] sm:$0xff]
        %v381 = vld [vmem:[#allocation14 + $0x20] sm:$0xff]
        %v382 = vld [vmem:[#allocation14 + $0x28] sm:$0xff]
        %v383 = vld [vmem:[#allocation14 + $0x30] sm:$0xff]
        %v384 = vld [vmem:[#allocation14 + $0x38] sm:$0xff]
        %s385 = sld [smem:[#allocation5]]
        %s386 = smul.f32 %s385, 2.7
        %v387 = vlaneseq
        %v388 = vshrl.u32 %v387, 7
        %v389 = vadd.s32 %v388, 8
        %v390 = vlaneseq
        %v391 = vand.u32 %v390, 127
        %v392 = vand.u32 %v388, 7
        %v393 = vand.u32 %v389, 7
        %vm394 = vcmp.eq.s32.totalorder %v392, 0
        %vm395 = vcmp.eq.s32.totalorder %v393, 0
        %v396 = vand.u32 %v391, 7
        %vm397 = vcmp.eq.s32.totalorder %v396, 0
        %vm398 = vmand %vm394, %vm397
        %vm399 = vmand %vm395, %vm397
        %vm400 = vcmask 130048
        %401 = vst.msk [vmem:[#allocation2] sm:$0xff] %vm400, 0.0
        %402 = vst.msk [vmem:[#allocation2 + $0x8] sm:$0xff] %vm400, 0.0
        %403 = vst.msk [vmem:[#allocation3] sm:$0xff] %vm400, 0.0
        %404 = vst.msk [vmem:[#allocation3 + $0x8] sm:$0xff] %vm400, 0.0
        loop: start=0, step=1, limit=3
        $region69: #{tpu_custom_call.1} parent=43 // loop_pre_header
          _
        $region70: #{tpu_custom_call.1} parent=43 // loop_header
          %s406 = sphi 0, %s410
          %p407 = scmp.ge.s32.totalorder %s406, 3
        $region71: #{tpu_custom_call.1} parent=43 // loop_header_branch
          %409 = sbr.rel (%p407) target = $region75
        $region72: #{tpu_custom_call.1} parent=43 // loop_body
          %s411 = smul.u32 %s406, 4
          %s412 = scalar_lea.vmem %s330, %s411 [#allocation15]
          %v413 = vld [vmem:[%s412] sm:$0xff]
          %vm414 = vcmask 64512
          %v416 = vsel %vm414, %v359, 0
          %418 = vmatprep.subr.mxu0 0.0
          %419 = vmatpush1.msra.mxu0 %v413
          %420 = vmatprep.subr.mxu0 0.0
          %421 = vmatpush1.msra.mxu0 0.0
          %422 = vmatprep.subr.mxu0 0.0
          %423 = vmatpush1.msra.mxu0 0.0
          %424 = vmatprep.subr.mxu0 0.0
          %425 = vmatpush1.msra.mxu0 0.0
          %426 = vmatprep.subr.mxu0 0.0
          %427 = vmatpush1.msra.mxu0 0.0
          %428 = vmatprep.subr.mxu0 0.0
          %429 = vmatpush1.msra.mxu0 0.0
          %430 = vmatprep.subr.mxu0 0.0
          %431 = vmatpush1.msra.mxu0 0.0
          %432 = vmatprep.subr.mxu0 0.0
          %433 = vmatpush1.msra.mxu0 0.0
          %434 = vmatprep.subr.mxu0 0.0
          %435 = vmatpush1.msra.mxu0 0.0
          %436 = vmatprep.subr.mxu0 0.0
          %437 = vmatpush1.msra.mxu0 0.0
          %438 = vmatprep.subr.mxu0 0.0
          %439 = vmatpush1.msra.mxu0 0.0
          %440 = vmatprep.subr.mxu0 0.0
          %441 = vmatpush1.msra.mxu0 0.0
          %442 = vmatprep.subr.mxu0 0.0
          %443 = vmatpush1.msra.mxu0 0.0
          %444 = vmatprep.subr.mxu0 0.0
          %445 = vmatpush1.msra.mxu0 0.0
          %446 = vmatprep.subr.mxu0 0.0
          %447 = vmatpush1.msra.mxu0 0.0
          %448 = vmatprep.subr.mxu0 0.0
          %449 = vmatpush1.msra.mxu0 0.0
          %450 = vmatprep.subr.mxu0 0.0
          %451 = vmatpush1.msra.mxu0 0.0
          %452 = vmatprep.subr.mxu0 0.0
          %453 = vmatpush1.msra.mxu0 0.0
          %454 = vmatprep.subr.mxu0 0.0
          %455 = vmatpush1.msra.mxu0 0.0
          %456 = vmatprep.subr.mxu0 0.0
          %457 = vmatpush1.msra.mxu0 0.0
          %458 = vmatprep.subr.mxu0 0.0
          %459 = vmatpush1.msra.mxu0 0.0
          %460 = vmatprep.subr.mxu0 0.0
          %461 = vmatpush1.msra.mxu0 0.0
          %462 = vmatprep.subr.mxu0 0.0
          %463 = vmatpush1.msra.mxu0 0.0
          %464 = vmatprep.subr.mxu0 0.0
          %465 = vmatpush1.msra.mxu0 0.0
          %466 = vmatprep.subr.mxu0 0.0
          %467 = vmatpush1.msra.mxu0 0.0
          %468 = vmatprep.subr.mxu0 0.0
          %469 = vmatpush1.msra.mxu0 0.0
          %470 = vmatprep.subr.mxu0 0.0
          %471 = vmatpush1.msra.mxu0 0.0
          %472 = vmatprep.subr.mxu0 0.0
          %473 = vmatpush1.msra.mxu0 0.0
          %474 = vmatprep.subr.mxu0 0.0
          %475 = vmatpush1.msra.mxu0 0.0
          %476 = vmatprep.subr.mxu0 0.0
          %477 = vmatpush1.msra.mxu0 0.0
          %478 = vmatprep.subr.mxu0 0.0
          %479 = vmatpush1.msra.mxu0 0.0
          %480 = vmatprep.subr.mxu0 0.0
          %481 = vmatpush1.msra.mxu0 0.0
          %482 = vmatprep.mubr.f32.mxu0 0.0
          %483 = vmatmul.mubr.f32.gmra.mrb[0].mxu0 %v416
          %v484 = vpop.f32.mrb[0].mxu0
          %v485 = vadd.f32 0.0, %v484
          %v486 = vpop.f32.mrb[0].mxu0
          %487 = vdwg.mxu0
          %v488 = vsel %vm400, %v485, 0.0
          %490 = vrot.lane.b32.xlu0 %v485, 124
          %v491 = vpop.permute.xlu0 %490
          %v493 = vsel %vm414, %v491, 0.0
          %vm494 = vcmask 523264
          %v496 = vsel %vm494, %v488, 0
          %v499 = vsel %vm494, %v493, 0
          %501 = vmatprep.subr.mxu0 0.0
          %502 = vmatpush1.msra.mxu0 %v361
          %503 = vmatprep.subr.mxu0 0.0
          %504 = vmatpush1.msra.mxu0 %v362
          %505 = vmatprep.subr.mxu0 0.0
          %506 = vmatpush1.msra.mxu0 %v363
          %507 = vmatprep.subr.mxu0 0.0
          %508 = vmatpush1.msra.mxu0 %v364
          %509 = vmatprep.subr.mxu0 0.0
          %510 = vmatpush1.msra.mxu0 %v365
          %511 = vmatprep.subr.mxu0 0.0
          %512 = vmatpush1.msra.mxu0 %v366
          %513 = vmatprep.subr.mxu0 0.0
          %514 = vmatpush1.msra.mxu0 %v367
          %515 = vmatprep.subr.mxu0 0.0
          %516 = vmatpush1.msra.mxu0 %v368
          %517 = vmatprep.subr.mxu0 0.0
          %518 = vmatpush1.msra.mxu0 0.0
          %519 = vmatprep.subr.mxu0 0.0
          %520 = vmatpush1.msra.mxu0 0.0
          %521 = vmatprep.subr.mxu0 0.0
          %522 = vmatpush1.msra.mxu0 0.0
          %523 = vmatprep.subr.mxu0 0.0
          %524 = vmatpush1.msra.mxu0 0.0
          %525 = vmatprep.subr.mxu0 0.0
          %526 = vmatpush1.msra.mxu0 0.0
          %527 = vmatprep.subr.mxu0 0.0
          %528 = vmatpush1.msra.mxu0 0.0
          %529 = vmatprep.subr.mxu0 0.0
          %530 = vmatpush1.msra.mxu0 0.0
          %531 = vmatprep.subr.mxu0 0.0
          %532 = vmatpush1.msra.mxu0 0.0
          %533 = vmatprep.subr.mxu0 0.0
          %534 = vmatpush1.msra.mxu0 0.0
          %535 = vmatprep.subr.mxu0 0.0
          %536 = vmatpush1.msra.mxu0 0.0
          %537 = vmatprep.subr.mxu0 0.0
          %538 = vmatpush1.msra.mxu0 0.0
          %539 = vmatprep.subr.mxu0 0.0
          %540 = vmatpush1.msra.mxu0 0.0
          %541 = vmatprep.subr.mxu0 0.0
          %542 = vmatpush1.msra.mxu0 0.0
          %543 = vmatprep.subr.mxu0 0.0
          %544 = vmatpush1.msra.mxu0 0.0
          %545 = vmatprep.subr.mxu0 0.0
          %546 = vmatpush1.msra.mxu0 0.0
          %547 = vmatprep.subr.mxu0 0.0
          %548 = vmatpush1.msra.mxu0 0.0
          %549 = vmatprep.subr.mxu0 0.0
          %550 = vmatpush1.msra.mxu0 0.0
          %551 = vmatprep.subr.mxu0 0.0
          %552 = vmatpush1.msra.mxu0 0.0
          %553 = vmatprep.subr.mxu0 0.0
          %554 = vmatpush1.msra.mxu0 0.0
          %555 = vmatprep.subr.mxu0 0.0
          %556 = vmatpush1.msra.mxu0 0.0
          %557 = vmatprep.subr.mxu0 0.0
          %558 = vmatpush1.msra.mxu0 0.0
          %559 = vmatprep.subr.mxu0 0.0
          %560 = vmatpush1.msra.mxu0 0.0
          %561 = vmatprep.subr.mxu0 0.0
          %562 = vmatpush1.msra.mxu0 0.0
          %563 = vmatprep.subr.mxu0 0.0
          %564 = vmatpush1.msra.mxu0 0.0
          %565 = vmatprep.mubr.f32.mxu0 0.0
          %566 = vmatmul.mubr.f32.gmra.mrb[0].mxu0 %v496
          %v567 = vpop.f32.mrb[0].mxu0
          %v568 = vadd.f32 0.0, %v567
          %v569 = vpop.f32.mrb[0].mxu0
          %570 = vmatprep.mubr.f32.mxu0 0.0
          %571 = vmatmul.mubr.f32.gmra.mrb[0].mxu0 %v499
          %v572 = vpop.f32.mrb[0].mxu0
          %v573 = vadd.f32 0.0, %v572
          %v574 = vpop.f32.mrb[0].mxu0
          %575 = vdwg.mxu0
          %v576 = vand.u32 2147483647, %v568
          %v577 = vand.u32 2147483647, %v573
          %v578 = vstv %s386
          %vm579 = vcmp.gt.f32.partialorder %v576, %v578
          %vm580 = vcmp.gt.f32.partialorder %v577, %v578
          %vm581 = vmor %vm579, %vm398
          %vm582 = vmor %vm580, %vm399
          %v583 = vsel %vm581, 1, 0
          %v584 = vsel %vm582, 1, 0
          %v585 = vcvt.s32.f32 %v583
          %v586 = vcvt.s32.f32 %v584
          %v587 = vsel %vm581, %v568, 0.0
          %v588 = vsel %vm582, %v573, 0.0
          %v590 = vsel %vm494, %v585, 0
          %v593 = vsel %vm494, %v586, 0
          %595 = vmatprep.subr.mxu0 0.0
          %596 = vmatpush1.msra.mxu0 %v377
          %597 = vmatprep.subr.mxu0 0.0
          %598 = vmatpush1.msra.mxu0 %v378
          %599 = vmatprep.subr.mxu0 0.0
          %600 = vmatpush1.msra.mxu0 %v379
          %601 = vmatprep.subr.mxu0 0.0
          %602 = vmatpush1.msra.mxu0 %v380
          %603 = vmatprep.subr.mxu0 0.0
          %604 = vmatpush1.msra.mxu0 %v381
          %605 = vmatprep.subr.mxu0 0.0
          %606 = vmatpush1.msra.mxu0 %v382
          %607 = vmatprep.subr.mxu0 0.0
          %608 = vmatpush1.msra.mxu0 %v383
          %609 = vmatprep.subr.mxu0 0.0
          %610 = vmatpush1.msra.mxu0 %v384
          %611 = vmatprep.subr.mxu0 0.0
          %612 = vmatpush1.msra.mxu0 0.0
          %613 = vmatprep.subr.mxu0 0.0
          %614 = vmatpush1.msra.mxu0 0.0
          %615 = vmatprep.subr.mxu0 0.0
          %616 = vmatpush1.msra.mxu0 0.0
          %617 = vmatprep.subr.mxu0 0.0
          %618 = vmatpush1.msra.mxu0 0.0
          %619 = vmatprep.subr.mxu0 0.0
          %620 = vmatpush1.msra.mxu0 0.0
          %621 = vmatprep.subr.mxu0 0.0
          %622 = vmatpush1.msra.mxu0 0.0
          %623 = vmatprep.subr.mxu0 0.0
          %624 = vmatpush1.msra.mxu0 0.0
          %625 = vmatprep.subr.mxu0 0.0
          %626 = vmatpush1.msra.mxu0 0.0
          %627 = vmatprep.subr.mxu0 0.0
          %628 = vmatpush1.msra.mxu0 0.0
          %629 = vmatprep.subr.mxu0 0.0
          %630 = vmatpush1.msra.mxu0 0.0
          %631 = vmatprep.subr.mxu0 0.0
          %632 = vmatpush1.msra.mxu0 0.0
          %633 = vmatprep.subr.mxu0 0.0
          %634 = vmatpush1.msra.mxu0 0.0
          %635 = vmatprep.subr.mxu0 0.0
          %636 = vmatpush1.msra.mxu0 0.0
          %637 = vmatprep.subr.mxu0 0.0
          %638 = vmatpush1.msra.mxu0 0.0
          %639 = vmatprep.subr.mxu0 0.0
          %640 = vmatpush1.msra.mxu0 0.0
          %641 = vmatprep.subr.mxu0 0.0
          %642 = vmatpush1.msra.mxu0 0.0
          %643 = vmatprep.subr.mxu0 0.0
          %644 = vmatpush1.msra.mxu0 0.0
          %645 = vmatprep.subr.mxu0 0.0
          %646 = vmatpush1.msra.mxu0 0.0
          %647 = vmatprep.subr.mxu0 0.0
          %648 = vmatpush1.msra.mxu0 0.0
          %649 = vmatprep.subr.mxu0 0.0
          %650 = vmatpush1.msra.mxu0 0.0
          %651 = vmatprep.subr.mxu0 0.0
          %652 = vmatpush1.msra.mxu0 0.0
          %653 = vmatprep.subr.mxu0 0.0
          %654 = vmatpush1.msra.mxu0 0.0
          %655 = vmatprep.subr.mxu0 0.0
          %656 = vmatpush1.msra.mxu0 0.0
          %657 = vmatprep.subr.mxu0 0.0
          %658 = vmatpush1.msra.mxu0 0.0
          %659 = vmatprep.mubr.f32.mxu0 0.0
          %660 = vmatmul.mubr.f32.gmra.mrb[0].mxu0 %v590
          %v661 = vpop.f32.mrb[0].mxu0
          %v662 = vadd.f32 0.0, %v661
          %v663 = vpop.f32.mrb[0].mxu0
          %664 = vmatprep.mubr.f32.mxu0 0.0
          %665 = vmatmul.mubr.f32.gmra.mrb[0].mxu0 %v593
          %v666 = vpop.f32.mrb[0].mxu0
          %v667 = vadd.f32 0.0, %v666
          %v668 = vpop.f32.mrb[0].mxu0
          %669 = vdwg.mxu0
          %v671 = vsel %vm494, %v587, 0
          %v674 = vsel %vm494, %v588, 0
          %676 = vmatprep.subr.mxu0 0.0
          %677 = vmatpush1.msra.mxu0 %v369
          %678 = vmatprep.subr.mxu0 0.0
          %679 = vmatpush1.msra.mxu0 %v370
          %680 = vmatprep.subr.mxu0 0.0
          %681 = vmatpush1.msra.mxu0 %v371
          %682 = vmatprep.subr.mxu0 0.0
          %683 = vmatpush1.msra.mxu0 %v372
          %684 = vmatprep.subr.mxu0 0.0
          %685 = vmatpush1.msra.mxu0 %v373
          %686 = vmatprep.subr.mxu0 0.0
          %687 = vmatpush1.msra.mxu0 %v374
          %688 = vmatprep.subr.mxu0 0.0
          %689 = vmatpush1.msra.mxu0 %v375
          %690 = vmatprep.subr.mxu0 0.0
          %691 = vmatpush1.msra.mxu0 %v376
          %692 = vmatprep.subr.mxu0 0.0
          %693 = vmatpush1.msra.mxu0 0.0
          %694 = vmatprep.subr.mxu0 0.0
          %695 = vmatpush1.msra.mxu0 0.0
          %696 = vmatprep.subr.mxu0 0.0
          %697 = vmatpush1.msra.mxu0 0.0
          %698 = vmatprep.subr.mxu0 0.0
          %699 = vmatpush1.msra.mxu0 0.0
          %700 = vmatprep.subr.mxu0 0.0
          %701 = vmatpush1.msra.mxu0 0.0
          %702 = vmatprep.subr.mxu0 0.0
          %703 = vmatpush1.msra.mxu0 0.0
          %704 = vmatprep.subr.mxu0 0.0
          %705 = vmatpush1.msra.mxu0 0.0
          %706 = vmatprep.subr.mxu0 0.0
          %707 = vmatpush1.msra.mxu0 0.0
          %708 = vmatprep.subr.mxu0 0.0
          %709 = vmatpush1.msra.mxu0 0.0
          %710 = vmatprep.subr.mxu0 0.0
          %711 = vmatpush1.msra.mxu0 0.0
          %712 = vmatprep.subr.mxu0 0.0
          %713 = vmatpush1.msra.mxu0 0.0
          %714 = vmatprep.subr.mxu0 0.0
          %715 = vmatpush1.msra.mxu0 0.0
          %716 = vmatprep.subr.mxu0 0.0
          %717 = vmatpush1.msra.mxu0 0.0
          %718 = vmatprep.subr.mxu0 0.0
          %719 = vmatpush1.msra.mxu0 0.0
          %720 = vmatprep.subr.mxu0 0.0
          %721 = vmatpush1.msra.mxu0 0.0
          %722 = vmatprep.subr.mxu0 0.0
          %723 = vmatpush1.msra.mxu0 0.0
          %724 = vmatprep.subr.mxu0 0.0
          %725 = vmatpush1.msra.mxu0 0.0
          %726 = vmatprep.subr.mxu0 0.0
          %727 = vmatpush1.msra.mxu0 0.0
          %728 = vmatprep.subr.mxu0 0.0
          %729 = vmatpush1.msra.mxu0 0.0
          %730 = vmatprep.subr.mxu0 0.0
          %731 = vmatpush1.msra.mxu0 0.0
          %732 = vmatprep.subr.mxu0 0.0
          %733 = vmatpush1.msra.mxu0 0.0
          %734 = vmatprep.subr.mxu0 0.0
          %735 = vmatpush1.msra.mxu0 0.0
          %736 = vmatprep.subr.mxu0 0.0
          %737 = vmatpush1.msra.mxu0 0.0
          %738 = vmatprep.subr.mxu0 0.0
          %739 = vmatpush1.msra.mxu0 0.0
          %740 = vmatprep.mubr.f32.mxu0 0.0
          %741 = vmatmul.mubr.f32.gmra.mrb[0].mxu0 %v671
          %v742 = vpop.f32.mrb[0].mxu0
          %v743 = vadd.f32 0.0, %v742
          %v744 = vpop.f32.mrb[0].mxu0
          %745 = vmatprep.mubr.f32.mxu0 0.0
          %746 = vmatmul.mubr.f32.gmra.mrb[0].mxu0 %v674
          %v747 = vpop.f32.mrb[0].mxu0
          %v748 = vadd.f32 0.0, %v747
          %v749 = vpop.f32.mrb[0].mxu0
          %750 = vdwg.mxu0
          %v752 = vsel %vm414, %v360, 0
          %754 = vmatprep.subr.mxu0 0.0
          %755 = vmatpush1.msra.mxu0 %v743
          %756 = vmatprep.subr.mxu0 0.0
          %757 = vmatpush1.msra.mxu0 0.0
          %758 = vmatprep.subr.mxu0 0.0
          %759 = vmatpush1.msra.mxu0 0.0
          %760 = vmatprep.subr.mxu0 0.0
          %761 = vmatpush1.msra.mxu0 0.0
          %762 = vmatprep.subr.mxu0 0.0
          %763 = vmatpush1.msra.mxu0 0.0
          %764 = vmatprep.subr.mxu0 0.0
          %765 = vmatpush1.msra.mxu0 0.0
          %766 = vmatprep.subr.mxu0 0.0
          %767 = vmatpush1.msra.mxu0 0.0
          %768 = vmatprep.subr.mxu0 0.0
          %769 = vmatpush1.msra.mxu0 0.0
          %770 = vmatprep.subr.mxu0 0.0
          %771 = vmatpush1.msra.mxu0 0.0
          %772 = vmatprep.subr.mxu0 0.0
          %773 = vmatpush1.msra.mxu0 0.0
          %774 = vmatprep.subr.mxu0 0.0
          %775 = vmatpush1.msra.mxu0 0.0
          %776 = vmatprep.subr.mxu0 0.0
          %777 = vmatpush1.msra.mxu0 0.0
          %778 = vmatprep.subr.mxu0 0.0
          %779 = vmatpush1.msra.mxu0 0.0
          %780 = vmatprep.subr.mxu0 0.0
          %781 = vmatpush1.msra.mxu0 0.0
          %782 = vmatprep.subr.mxu0 0.0
          %783 = vmatpush1.msra.mxu0 0.0
          %784 = vmatprep.subr.mxu0 0.0
          %785 = vmatpush1.msra.mxu0 0.0
          %786 = vmatprep.subr.mxu0 0.0
          %787 = vmatpush1.msra.mxu0 0.0
          %788 = vmatprep.subr.mxu0 0.0
          %789 = vmatpush1.msra.mxu0 0.0
          %790 = vmatprep.subr.mxu0 0.0
          %791 = vmatpush1.msra.mxu0 0.0
          %792 = vmatprep.subr.mxu0 0.0
          %793 = vmatpush1.msra.mxu0 0.0
          %794 = vmatprep.subr.mxu0 0.0
          %795 = vmatpush1.msra.mxu0 0.0
          %796 = vmatprep.subr.mxu0 0.0
          %797 = vmatpush1.msra.mxu0 0.0
          %798 = vmatprep.subr.mxu0 0.0
          %799 = vmatpush1.msra.mxu0 0.0
          %800 = vmatprep.subr.mxu0 0.0
          %801 = vmatpush1.msra.mxu0 0.0
          %802 = vmatprep.subr.mxu0 0.0
          %803 = vmatpush1.msra.mxu0 0.0
          %804 = vmatprep.subr.mxu0 0.0
          %805 = vmatpush1.msra.mxu0 0.0
          %806 = vmatprep.subr.mxu0 0.0
          %807 = vmatpush1.msra.mxu0 0.0
          %808 = vmatprep.subr.mxu0 0.0
          %809 = vmatpush1.msra.mxu0 0.0
          %810 = vmatprep.subr.mxu0 0.0
          %811 = vmatpush1.msra.mxu0 0.0
          %812 = vmatprep.subr.mxu0 0.0
          %813 = vmatpush1.msra.mxu0 0.0
          %814 = vmatprep.subr.mxu0 0.0
          %815 = vmatpush1.msra.mxu0 0.0
          %816 = vmatprep.subr.mxu0 0.0
          %817 = vmatpush1.msra.mxu0 0.0
          %818 = vmatprep.mubr.f32.mxu0 0.0
          %819 = vmatmul.mubr.f32.gmra.mrb[0].mxu0 %v752
          %v820 = vpop.f32.mrb[0].mxu0
          %v821 = vadd.f32 0.0, %v820
          %v822 = vpop.f32.mrb[0].mxu0
          %823 = vdwg.mxu0
          %v824 = vsel %vm400, %v662, 0.0
          %v825 = vrot.slane %v824, 4
          %v826 = vadd.f32 %v824, %v825
          %v827 = vrot.slane %v826, 2
          %v828 = vadd.f32 %v826, %v827
          %v829 = vrot.slane %v828, 1
          %v830 = vadd.f32 %v828, %v829
          %v831 = vmax.f32 %v830, 1.0
          %v832 = vrcp.pop %v831
          %v833 = vmul.f32 %v821, %v832
          %834 = vmatprep.subr.mxu0 0.0
          %835 = vmatpush1.msra.mxu0 %v748
          %836 = vmatprep.subr.mxu0 0.0
          %837 = vmatpush1.msra.mxu0 0.0
          %838 = vmatprep.subr.mxu0 0.0
          %839 = vmatpush1.msra.mxu0 0.0
          %840 = vmatprep.subr.mxu0 0.0
          %841 = vmatpush1.msra.mxu0 0.0
          %842 = vmatprep.subr.mxu0 0.0
          %843 = vmatpush1.msra.mxu0 0.0
          %844 = vmatprep.subr.mxu0 0.0
          %845 = vmatpush1.msra.mxu0 0.0
          %846 = vmatprep.subr.mxu0 0.0
          %847 = vmatpush1.msra.mxu0 0.0
          %848 = vmatprep.subr.mxu0 0.0
          %849 = vmatpush1.msra.mxu0 0.0
          %850 = vmatprep.subr.mxu0 0.0
          %851 = vmatpush1.msra.mxu0 0.0
          %852 = vmatprep.subr.mxu0 0.0
          %853 = vmatpush1.msra.mxu0 0.0
          %854 = vmatprep.subr.mxu0 0.0
          %855 = vmatpush1.msra.mxu0 0.0
          %856 = vmatprep.subr.mxu0 0.0
          %857 = vmatpush1.msra.mxu0 0.0
          %858 = vmatprep.subr.mxu0 0.0
          %859 = vmatpush1.msra.mxu0 0.0
          %860 = vmatprep.subr.mxu0 0.0
          %861 = vmatpush1.msra.mxu0 0.0
          %862 = vmatprep.subr.mxu0 0.0
          %863 = vmatpush1.msra.mxu0 0.0
          %864 = vmatprep.subr.mxu0 0.0
          %865 = vmatpush1.msra.mxu0 0.0
          %866 = vmatprep.subr.mxu0 0.0
          %867 = vmatpush1.msra.mxu0 0.0
          %868 = vmatprep.subr.mxu0 0.0
          %869 = vmatpush1.msra.mxu0 0.0
          %870 = vmatprep.subr.mxu0 0.0
          %871 = vmatpush1.msra.mxu0 0.0
          %872 = vmatprep.subr.mxu0 0.0
          %873 = vmatpush1.msra.mxu0 0.0
          %874 = vmatprep.subr.mxu0 0.0
          %875 = vmatpush1.msra.mxu0 0.0
          %876 = vmatprep.subr.mxu0 0.0
          %877 = vmatpush1.msra.mxu0 0.0
          %878 = vmatprep.subr.mxu0 0.0
          %879 = vmatpush1.msra.mxu0 0.0
          %880 = vmatprep.subr.mxu0 0.0
          %881 = vmatpush1.msra.mxu0 0.0
          %882 = vmatprep.subr.mxu0 0.0
          %883 = vmatpush1.msra.mxu0 0.0
          %884 = vmatprep.subr.mxu0 0.0
          %885 = vmatpush1.msra.mxu0 0.0
          %886 = vmatprep.subr.mxu0 0.0
          %887 = vmatpush1.msra.mxu0 0.0
          %888 = vmatprep.subr.mxu0 0.0
          %889 = vmatpush1.msra.mxu0 0.0
          %890 = vmatprep.subr.mxu0 0.0
          %891 = vmatpush1.msra.mxu0 0.0
          %892 = vmatprep.subr.mxu0 0.0
          %893 = vmatpush1.msra.mxu0 0.0
          %894 = vmatprep.subr.mxu0 0.0
          %895 = vmatpush1.msra.mxu0 0.0
          %896 = vmatprep.subr.mxu0 0.0
          %897 = vmatpush1.msra.mxu0 0.0
          %898 = vmatprep.mubr.f32.mxu0 0.0
          %899 = vmatmul.mubr.f32.gmra.mrb[0].mxu0 %v752
          %v900 = vpop.f32.mrb[0].mxu0
          %v901 = vadd.f32 0.0, %v900
          %v902 = vpop.f32.mrb[0].mxu0
          %903 = vdwg.mxu0
          %v904 = vsel %vm414, %v667, 0.0
          %v905 = vrot.slane %v904, 4
          %v906 = vadd.f32 %v904, %v905
          %v907 = vrot.slane %v906, 2
          %v908 = vadd.f32 %v906, %v907
          %v909 = vrot.slane %v908, 1
          %v910 = vadd.f32 %v908, %v909
          %v911 = vmax.f32 %v910, 1.0
          %v912 = vrcp.pop %v911
          %v913 = vmul.f32 %v901, %v912
          %915 = vrot.lane.b32.xlu0 %v913, 4
          %v916 = vpop.permute.xlu0 %915
          %vm918 = vcmask 31744
          %v919 = vsel %vm918, 0.0, %v916
          %vm920 = vcmask 97280
          %v921 = vsel %vm920, %v919, 0.0
          %923 = vrot.lane.b32.xlu0 %v912, 4
          %v924 = vpop.permute.xlu0 %923
          %v926 = vsel %vm918, 0.0, %v924
          %v927 = vsel %vm920, %v926, 0.0
          %v928 = vadd.f32 %v833, %v921
          %v929 = vadd.f32 %v832, %v927
          %s930 = scalar_lea.vmem [#allocation2], %s411
          %v931 = vld [vmem:[%s930] sm:$0xff]
          %v932 = vadd.f32 %v931, %v928
          %933 = vst.msk [vmem:[%s930] sm:$0xff] %vm400, %v932
          %s934 = scalar_lea.vmem [#allocation3], %s411
          %v935 = vld [vmem:[%s934] sm:$0xff]
          %v936 = vadd.f32 %v935, %v929
          %937 = vst.msk [vmem:[%s934] sm:$0xff] %vm400, %v936
        $region73: #{tpu_custom_call.1} parent=43 // loop_footer
          %s410 = sadd.s32 1, %s406
        $region74: #{tpu_custom_call.1} parent=43 // loop_footer_branch
          %405 = sbr.rel target = $region70
        $region75: #{tpu_custom_call.1} parent=43 // loop_exit
          _
        %v938 = vld [vmem:[#allocation2] sm:$0xff]
        %v939 = vld [vmem:[#allocation2 + $0x8] sm:$0xff]
        %v940 = vld [vmem:[#allocation3] sm:$0xff]
        %v941 = vld [vmem:[#allocation3 + $0x8] sm:$0xff]
        %v942 = vrcp.pop %v940
        %v943 = vmul.f32 %v938, %v942
        %v944 = vrcp.pop %v941
        %v945 = vmul.f32 %v939, %v944
        %946 = vst.msk [vmem:[%s358] sm:$0xff] %vm400, %v943
        %947 = vst.msk [vmem:[%s358 + $0x8] sm:$0xff] %vm400, %v945
        %s948 = sand.u32 %s183, 1
        %s949 = scalar_lea.sflag [#allocation8], %s948
        %s950 = sand.u32 %s183, 1
        %s951 = smul.addr %s950, 16
        %s952 = scalar_lea.vmem [#allocation17], %s951
        // Predicated region
        $region76: #{tpu_custom_call.1} parent=43 // pred_check
          %p953 = pneg %p193
        $region77: #{tpu_custom_call.1} parent=43 // pred_check_branch
          %955 = sbr.rel (%p953) target = $region79
        $region78: #{tpu_custom_call.1} parent=43 // pred_region
          %s957 = ssub.s32 256, 256
          %958 = vsyncadd %s949, %s957
          %s959 = smul.addr %s33, 2
          %s960 = smul.addr %s32, 8
          %s961 = sadd.s32 %s959, %s960
          %s962 = smul.addr %s961, 128
          %s963 = scalar_lea.hbm %s7, %s962
          %s964 = sshll.u32 %s952, 4
          %s965 = int_to_ptr.vmem [resolvable:$true] %s964
          %970 = dma.vmem_to_hbm [thread:$0]  %s965, 256, %s963, %s949, 128, 128, 8
        $region79: #{tpu_custom_call.1} parent=43 // pred_fallthru
          _
      $region44: #{tpu_custom_call.1} parent=5 // pred_fallthru
        _
      %p971 = scmp.le.s32.totalorder 2, %s23
      // Predicated region
      $region80: #{tpu_custom_call.1} parent=5 // pred_check
        %p972 = pneg %p971
      $region81: #{tpu_custom_call.1} parent=5 // pred_check_branch
        %974 = sbr.rel (%p972) target = $region83
      $region82: #{tpu_custom_call.1} parent=5 // pred_region
        %s975 = ssub.s32 %s23, 2
        // Predicated region
        $region84: #{tpu_custom_call.1} parent=82 // pred_check
          %p976 = pneg %p199
        $region85: #{tpu_custom_call.1} parent=82 // pred_check_branch
          %978 = sbr.rel (%p976) target = $region87
        $region86: #{tpu_custom_call.1} parent=82 // pred_region
          %s979 = sand.u32 %s184, 1
          %s980 = scalar_lea.sflag [#allocation8], %s979
          %s981 = sand.u32 %s184, 1
          %s982 = smul.addr %s981, 16
          %s983 = scalar_lea.vmem [#allocation17], %s982
          %984 = dma.done %s980, 256
        $region87: #{tpu_custom_call.1} parent=82 // pred_fallthru
          _
      $region83: #{tpu_custom_call.1} parent=5 // pred_fallthru
        _
    $region6: #{tpu_custom_call.1} parent=1 // loop_footer
      %s27 = sadd.s32 1, %s23
    $region7: #{tpu_custom_call.1} parent=1 // loop_footer_branch
      %22 = sbr.rel target = $region3
    $region8: #{tpu_custom_call.1} parent=1 // loop_exit
      _
    %985 = vsyncpa [#allocation7], 1
    %s986 = scalar_lea.sflag [#allocation7], 1
    %987 = vsyncpa %s986, 1
    %988 = vsyncpa [#allocation10], 1
    %989 = vsyncpa [#allocation13], 1
    %990 = vsyncpa [#allocation16], 1
    %s991 = scalar_lea.sflag [#allocation16], 1
    %992 = vsyncpa %s991, 1
    %993 = vsyncpa [#allocation8], 1
    %s994 = scalar_lea.sflag [#allocation8], 1
    %995 = vsyncpa %s994, 1

</llo_original>
